<compile_context>
chip_gen: v7x
topology: tpu7x:2x2x1
jax: 0.10.0
libtpu: 0.0.40
codegen_flags: <defaults>
</compile_context>

<pallas_src>
import numpy as np

import jax
import jax.numpy as jnp
from jax.experimental import pallas as pl
from jax.experimental.pallas import tpu as pltpu


# ----------------------------------------------------------------------------
# Kernel
# ----------------------------------------------------------------------------
def _make_double_conv_kernel(H):
    def kernel(x_ref, w1_ref, b1_ref, w2_ref, b2_ref, o_ref):
        M, WCout = o_ref.shape

        # Per-image row index, built ONCE (JAX does not CSE broadcast/iota).
        row = jax.lax.broadcasted_iota(jnp.int32, (M, WCout), 0) % H
        first_row = row == 0
        last_row = row == H - 1

        # +/-1 row shifts realize the H-direction SAME padding on the per-tap
        # matmul results (register-resident XLU/VPU work) instead of staging a
        # padded copy of the input in VMEM.
        def shift_down(p):   # out[r] = p[r-1]; zero at each image's first row
            return jnp.where(first_row, 0.0, jnp.roll(p, 1, axis=0))

        def shift_up(p):     # out[r] = p[r+1]; zero at each image's last row
            return jnp.where(last_row, 0.0, jnp.roll(p, -1, axis=0))

        def conv_bn_relu(inp, w_ref, b_ref):
            # 3 MXU matmuls (one per kernel row dy) contracting the whole
            # flattened W*Cin lane axis, f32 accumulation.  Accumulator is
            # initialized by the dy=1 matmul.
            # TODO(synk): on v6e/v7x, pack the 3 dy taps into one K=3*W*Cin
            #             matmul (lane-concat of shifted inputs) to better
            #             fill the 256-deep MXU.
            acc = jnp.dot(inp, w_ref[1], preferred_element_type=jnp.float32)
            acc = acc + shift_down(
                jnp.dot(inp, w_ref[0], preferred_element_type=jnp.float32))
            acc = acc + shift_up(
                jnp.dot(inp, w_ref[2], preferred_element_type=jnp.float32))
            # Folded-BN bias + ReLU kept in f32 (v5e VPU has no bf16).
            return jnp.maximum(acc + b_ref[...], 0.0)

        y1 = conv_bn_relu(x_ref[...], w1_ref, b1_ref)            # (M, WCout) f32
        # Stage-2 input never leaves registers/VMEM; cast only for the MXU.
        y2 = conv_bn_relu(y1.astype(w2_ref.dtype), w2_ref, b2_ref)
        o_ref[...] = y2                      # lane-dense store (minor = WCout)

    return kernel


# ----------------------------------------------------------------------------
# Tiling / budget helpers
# ----------------------------------------------------------------------------
def _pick_tb(N, H, WCin, WCout, itemsize):
    """Batch tile per grid step.

    Goals (perf review): M = TB*H >= 256 to fill the MXU M dimension and
    amortize the ~0.35us per-step overhead; fit a conservative VMEM budget;
    and keep >= 2 grid steps when N >= 2 so the "parallel" axis can shard
    across v7x's two TensorCores (v5e/v6e have a single TC).
    """
    per_image = H * (2 * (WCin * itemsize + WCout * 4) + 6 * WCout * 4)
    tb_vmem = max(1, (12 << 20) // max(per_image, 1))
    tb = max(1, min(N, 32, -(-256 // H), tb_vmem))
    if N >= 2 and -(-N // tb) < 2:     # would be a single grid step
        tb = -(-N // 2)                # -> 2 steps (only ever lowers tb)
    return tb


def _vmem_limit_bytes(TB, H, WCin, WCout, compute_dtype):
    ib = jnp.dtype(compute_dtype).itemsize
    M = TB * H
    blocks = 2 * M * (WCin * ib + WCout * 4)          # double-buffered x / out
    weights = 2 * 3 * (WCin + WCout) * WCout * ib + 2 * 2 * WCout * 4
    interm = 6 * M * WCout * 4                        # live f32 intermediates
    est = blocks + weights + interm + (4 << 20)
    # Explicit budget (review: re-derive for v7x's 64 MiB physical VMEM).
    return int(min(max(est, 16 << 20), 60 << 20))


# ----------------------------------------------------------------------------
# Wrappers
# ----------------------------------------------------------------------------
@jax.jit
def double_conv_forward_nhwc(x_nhwc, wbig1, blane1, wbig2, blane2):
    """NHWC in / NHWC out.  Feed this directly from an NHWC model to keep the
    layout transposes out of the hot path."""
    N, H, W, Cin = x_nhwc.shape
    WCin = W * Cin
    WCout = blane1.shape[-1]
    Cout = WCout // W

    assert H % 8 == 0, "H must be a multiple of 8 (sublane tile)"
    assert WCin <= 1024 and WCout <= 1024, (
        "lane-dense weight grows O(W^2*Cin*Cout); W-tile it (block-tridiagonal)"
        " before using this kernel at larger widths")

    cdtype = wbig1.dtype                       # matmul operand dtype (f32/bf16)
    x = x_nhwc.reshape(N * H, WCin).astype(cdtype)

    TB = _pick_tb(N, H, WCin, WCout, jnp.dtype(cdtype).itemsize)
    G = -(-N // TB)
    if G * TB != N:                            # pad batch tail (sliced off below)
        x = jnp.pad(x, ((0, (G * TB - N) * H), (0, 0)))
    M = TB * H

    out = pl.pallas_call(
        _make_double_conv_kernel(H),
        out_shape=jax.ShapeDtypeStruct((G * M, WCout), jnp.float32),
        grid=(G,),
        in_specs=[
            pl.BlockSpec((M, WCin), lambda n: (n, 0)),
            pl.BlockSpec((3, WCin, WCout), lambda n: (0, 0, 0)),
            pl.BlockSpec((1, WCout), lambda n: (0, 0)),
            pl.BlockSpec((3, WCout, WCout), lambda n: (0, 0, 0)),
            pl.BlockSpec((1, WCout), lambda n: (0, 0)),
        ],
        out_specs=pl.BlockSpec((M, WCout), lambda n: (n, 0)),
        compiler_params=pltpu.CompilerParams(
            dimension_semantics=("parallel",),
            vmem_limit_bytes=_vmem_limit_bytes(TB, H, WCin, WCout, cdtype)),
    )(x,
      wbig1, blane1.reshape(1, WCout).astype(jnp.float32),
      wbig2, blane2.reshape(1, WCout).astype(jnp.float32))

    return out[:N * H].reshape(N, H, W, Cout)


@jax.jit
def double_conv_forward(x_nchw, wbig1, blane1, wbig2, blane2):
    """PyTorch-style NCHW interface.  The two transposes each add a full extra
    HBM read+write of x / out; prefer double_conv_forward_nhwc in NHWC models."""
    x = jnp.transpose(x_nchw, (0, 2, 3, 1))
    y = double_conv_forward_nhwc(x, wbig1, blane1, wbig2, blane2)
    return jnp.transpose(y, (0, 3, 1, 2))


# ----------------------------------------------------------------------------
# Parameter preparation (prepare-time, outside the kernel)
# ----------------------------------------------------------------------------
def _build_lane_weights(w_folded, W):
    """(3,3,cin,cout) conv weights -> (3, W*cin, W*cout) per-dy lane matmuls.

    Wbig[dy, (w+dx-1)*cin + ci, w*cout + co] = w_folded[dy, dx, ci, co]
    (entries whose input column w+dx-1 falls outside [0, W) are omitted,
     which realizes the SAME zero padding along W).
    """
    kh, kw, cin, cout = w_folded.shape
    L = W * cin
    place = np.zeros((kw, L, W * cin), np.float32)
    for dx in range(kw):
        for wcol in range(W):
            src = wcol + dx - 1                     # input column of this tap
            if 0 <= src < W:
                place[dx, src * cin:src * cin + cin,
                      wcol * cin:wcol * cin + cin] = np.eye(cin, dtype=np.float32)
    place = jnp.asarray(place)                                  # (3, L, W*cin)
    eye_w = jnp.asarray(np.eye(W, dtype=np.float32))            # (W, W)
    kron = (eye_w[None, None, :, None, :, None] *
            w_folded[:, :, None, :, None, :]).reshape(kh, kw, W * cin, W * cout)
    return jnp.einsum('xlk,yxkm->ylm', place, kron)             # (3, L, W*cout)


def init_double_conv_params(key, in_channels, out_channels):
    """PyTorch-default-style init (Conv2d uniform, BatchNorm2d eval defaults)."""
    keys = jax.random.split(key, 4)
    eps = 1e-5

    def conv_init(kw_, kb_, cin, cout):
        fan_in = cin * 3 * 3
        bound = 1.0 / np.sqrt(fan_in)
        w = jax.random.uniform(kw_, (3, 3, cin, cout), jnp.float32, -bound, bound)
        b = jax.random.uniform(kb_, (cout,), jnp.float32, -bound, bound)
        return w, b

    w1, b1 = conv_init(keys[0], keys[1], in_channels, out_channels)
    w2, b2 = conv_init(keys[2], keys[3], out_channels, out_channels)

    ones = jnp.ones((out_channels,), jnp.float32)
    zeros = jnp.zeros((out_channels,), jnp.float32)
    return dict(w1=w1, b1=b1, w2=w2, b2=b2,
                gamma1=ones, beta1=zeros, mean1=zeros, var1=ones,
                gamma2=ones, beta2=zeros, mean2=zeros, var2=ones,
                eps=eps)


def prepare_kernel_params(params, W, compute_dtype=jnp.float32):
    """Fold eval-mode BN into conv weights/bias and build lane-dense weights.

    compute_dtype controls the MXU operand dtype (bf16 on v6e/v7x halves HBM
    traffic and doubles MXU throughput); the folded bias stays f32 (VPU path).
    """
    eps = params["eps"]

    def fold(w, b, gamma, beta, mean, var):
        scale = gamma / jnp.sqrt(var + eps)          # per-output-channel
        return w * scale, beta + (b - mean) * scale

    wf1, bf1 = fold(params["w1"], params["b1"], params["gamma1"],
                    params["beta1"], params["mean1"], params["var1"])
    wf2, bf2 = fold(params["w2"], params["b2"], params["gamma2"],
                    params["beta2"], params["mean2"], params["var2"])
    return (_build_lane_weights(wf1, W).astype(compute_dtype),
            jnp.tile(bf1, W).astype(jnp.float32),
            _build_lane_weights(wf2, W).astype(compute_dtype),
            jnp.tile(bf2, W).astype(jnp.float32))


# ----------------------------------------------------------------------------
# Pure-JAX reference (lax conv) for the correctness check
# ----------------------------------------------------------------------------
def _reference_forward(x_nchw, params):
    eps = params["eps"]
    x = jnp.transpose(x_nchw, (0, 2, 3, 1)).astype(jnp.float32)

    def block(x, w, b, gamma, beta, mean, var):
        y = jax.lax.conv_general_dilated(
            x, w, window_strides=(1, 1), padding="SAME",
            dimension_numbers=("NHWC", "HWIO", "NHWC")) + b
        y = (y - mean) * gamma / jnp.sqrt(var + eps) + beta
        return jnp.maximum(y, 0.0)

    y = block(x, params["w1"], params["b1"], params["gamma1"],
              params["beta1"], params["mean1"], params["var1"])
    y = block(y, params["w2"], params["b2"], params["gamma2"],
              params["beta2"], params["mean2"], params["var2"])
    return jnp.transpose(y, (0, 3, 1, 2))


if __name__ == "__main__":
    key = jax.random.PRNGKey(0)
    k_x, k_p = jax.random.split(key)

    N, Cin, H, W = 2, 4, 16, 16
    Cout = 8

    x = jax.random.normal(k_x, (N, Cin, H, W), jnp.float32)
    params = init_double_conv_params(k_p, Cin, Cout)
    ref = jax.block_until_ready(_reference_forward(x, params))

    # f32 MXU operands: exact check against the lax reference.
    wp32 = prepare_kernel_params(params, W, jnp.float32)
    out32 = jax.block_until_ready(double_conv_forward(x, *wp32))
    assert out32.shape == (N, Cout, H, W), out32.shape
    assert jnp.allclose(out32, ref, atol=1e-4, rtol=1e-4), \
        float(jnp.max(jnp.abs(out32 - ref)))

    # bf16 MXU operands (v6e/v7x fast path), f32 accumulation + f32 VPU work.
    wp16 = prepare_kernel_params(params, W, jnp.bfloat16)
    out16 = jax.block_until_ready(double_conv_forward(x, *wp16))
    assert out16.shape == (N, Cout, H, W), out16.shape
    assert jnp.allclose(out16, ref, atol=1.5e-1, rtol=1e-1), \
        float(jnp.max(jnp.abs(out16 - ref)))

    print("KERNEL_OK")
</pallas_src>

<mosaic_0001>
module attributes {stable_mosaic.version = 11 : i64} {
  func.func @kernel(%arg0: i32, %arg1: memref<16x64xf32, #tpu.memory_space<vmem>>, %arg2: memref<3x64x128xf32, #tpu.memory_space<vmem>>, %arg3: memref<1x128xf32, #tpu.memory_space<vmem>>, %arg4: memref<3x128x128xf32, #tpu.memory_space<vmem>>, %arg5: memref<1x128xf32, #tpu.memory_space<vmem>>, %arg6: memref<16x128xf32, #tpu.memory_space<vmem>>) attributes {dimension_semantics = [#tpu.dimension_semantics<parallel>], iteration_bounds = array<i64: 2>, scalar_prefetch = 0 : i64, scratch_operands = 0 : i64, tpu.core_type = #tpu.core_type<tc>, window_params = [{transform_indices = @transform_0, window_bounds = array<i64: 16, 64>}, {pipeline_mode = #tpu.pipeline_mode<synchronous>, transform_indices = @transform_1, window_bounds = array<i64: 3, 64, 128>}, {pipeline_mode = #tpu.pipeline_mode<synchronous>, transform_indices = @transform_2, window_bounds = array<i64: 1, 128>}, {pipeline_mode = #tpu.pipeline_mode<synchronous>, transform_indices = @transform_3, window_bounds = array<i64: 3, 128, 128>}, {pipeline_mode = #tpu.pipeline_mode<synchronous>, transform_indices = @transform_4, window_bounds = array<i64: 1, 128>}, {transform_indices = @transform_5, window_bounds = array<i64: 16, 128>}]} {
    %0 = tpu.iota {dimensions = array<i32: 0>} : vector<16x128xi32>
    %c16_i32 = arith.constant 16 : i32
    %c0_i32 = arith.constant 0 : i32
    %1 = arith.cmpi eq, %c16_i32, %c0_i32 : i32
    %c1_i32 = arith.constant 1 : i32
    %2 = arith.select %1, %c1_i32, %c16_i32 : i32
    %3 = vector.broadcast %2 : i32 to vector<16x128xi32>
    %4 = arith.remsi %0, %3 : vector<16x128xi32>
    %c0_i32_0 = arith.constant 0 : i32
    %5 = vector.broadcast %c0_i32_0 : i32 to vector<16x128xi32>
    %6 = arith.cmpi ne, %4, %5 : vector<16x128xi32>
    %c0_i32_1 = arith.constant 0 : i32
    %7 = vector.broadcast %c0_i32_1 : i32 to vector<16x128xi32>
    %8 = arith.cmpi slt, %4, %7 : vector<16x128xi32>
    %c0_i32_2 = arith.constant 0 : i32
    %9 = arith.cmpi slt, %2, %c0_i32_2 : i32
    %10 = vector.broadcast %9 : i1 to vector<16x128xi1>
    %11 = vector.broadcast %10 : vector<16x128xi1> to vector<16x128xi1>
    %12 = arith.xori %8, %11 : vector<16x128xi1>
    %13 = arith.andi %12, %6 : vector<16x128xi1>
    %14 = vector.broadcast %2 : i32 to vector<16x128xi32>
    %15 = arith.addi %4, %14 : vector<16x128xi32>
    %16 = arith.select %13, %15, %4 : vector<16x128xi1>, vector<16x128xi32>
    %c0_i32_3 = arith.constant 0 : i32
    %17 = vector.broadcast %c0_i32_3 : i32 to vector<16x128xi32>
    %18 = arith.cmpi eq, %16, %17 : vector<16x128xi32>
    %c15_i32 = arith.constant 15 : i32
    %19 = vector.broadcast %c15_i32 : i32 to vector<16x128xi32>
    %20 = arith.cmpi eq, %16, %19 : vector<16x128xi32>
    %c0 = arith.constant 0 : index
    %c0_4 = arith.constant 0 : index
    %21 = vector.load %arg1[%c0, %c0_4] : memref<16x64xf32, #tpu.memory_space<vmem>>, vector<16x64xf32>
    %c1 = arith.constant 1 : index
    %c0_5 = arith.constant 0 : index
    %c0_6 = arith.constant 0 : index
    %22 = vector.load %arg2[%c1, %c0_5, %c0_6] : memref<3x64x128xf32, #tpu.memory_space<vmem>>, vector<1x64x128xf32>
    %23 = vector.shape_cast %22 : vector<1x64x128xf32> to vector<64x128xf32>
    %cst = arith.constant dense<0.000000e+00> : vector<16x128xf32>
    %24 = tpu.matmul %21, %23, %cst {dimension_numbers = #tpu.dot_dimension_numbers<[1], [0], [0], [1], [0, 0, 1, 1], [], []>} : vector<16x64xf32>, vector<64x128xf32>, vector<16x128xf32> -> vector<16x128xf32>
    %c0_7 = arith.constant 0 : index
    %c0_8 = arith.constant 0 : index
    %c0_9 = arith.constant 0 : index
    %25 = vector.load %arg2[%c0_7, %c0_8, %c0_9] : memref<3x64x128xf32, #tpu.memory_space<vmem>>, vector<1x64x128xf32>
    %26 = vector.shape_cast %25 : vector<1x64x128xf32> to vector<64x128xf32>
    %cst_10 = arith.constant dense<0.000000e+00> : vector<16x128xf32>
    %27 = tpu.matmul %21, %26, %cst_10 {dimension_numbers = #tpu.dot_dimension_numbers<[1], [0], [0], [1], [0, 0, 1, 1], [], []>} : vector<16x64xf32>, vector<64x128xf32>, vector<16x128xf32> -> vector<16x128xf32>
    %28 = vector.extract_strided_slice %27 {offsets = [15, 0], sizes = [1, 128], strides = [1, 1]} : vector<16x128xf32> to vector<1x128xf32>
    %29 = vector.extract_strided_slice %27 {offsets = [0, 0], sizes = [15, 128], strides = [1, 1]} : vector<16x128xf32> to vector<15x128xf32>
    %30 = tpu.concatenate %28, %29 in 0 : vector<1x128xf32>, vector<15x128xf32> -> vector<16x128xf32>
    %cst_11 = arith.constant 0.000000e+00 : f32
    %31 = vector.broadcast %cst_11 : f32 to vector<16x128xf32>
    %32 = arith.select %18, %31, %30 : vector<16x128xi1>, vector<16x128xf32>
    %33 = arith.addf %24, %32 : vector<16x128xf32>
    %c2 = arith.constant 2 : index
    %c0_12 = arith.constant 0 : index
    %c0_13 = arith.constant 0 : index
    %34 = vector.load %arg2[%c2, %c0_12, %c0_13] : memref<3x64x128xf32, #tpu.memory_space<vmem>>, vector<1x64x128xf32>
    %35 = vector.shape_cast %34 : vector<1x64x128xf32> to vector<64x128xf32>
    %cst_14 = arith.constant dense<0.000000e+00> : vector<16x128xf32>
    %36 = tpu.matmul %21, %35, %cst_14 {dimension_numbers = #tpu.dot_dimension_numbers<[1], [0], [0], [1], [0, 0, 1, 1], [], []>} : vector<16x64xf32>, vector<64x128xf32>, vector<16x128xf32> -> vector<16x128xf32>
    %37 = vector.extract_strided_slice %36 {offsets = [1, 0], sizes = [15, 128], strides = [1, 1]} : vector<16x128xf32> to vector<15x128xf32>
    %38 = vector.extract_strided_slice %36 {offsets = [0, 0], sizes = [1, 128], strides = [1, 1]} : vector<16x128xf32> to vector<1x128xf32>
    %39 = tpu.concatenate %37, %38 in 0 : vector<15x128xf32>, vector<1x128xf32> -> vector<16x128xf32>
    %cst_15 = arith.constant 0.000000e+00 : f32
    %40 = vector.broadcast %cst_15 : f32 to vector<16x128xf32>
    %41 = arith.select %20, %40, %39 : vector<16x128xi1>, vector<16x128xf32>
    %42 = arith.addf %33, %41 : vector<16x128xf32>
    %c0_16 = arith.constant 0 : index
    %c0_17 = arith.constant 0 : index
    %43 = vector.load %arg3[%c0_16, %c0_17] : memref<1x128xf32, #tpu.memory_space<vmem>>, vector<1x128xf32>
    %44 = vector.broadcast %43 : vector<1x128xf32> to vector<16x128xf32>
    %45 = arith.addf %42, %44 : vector<16x128xf32>
    %cst_18 = arith.constant 0.000000e+00 : f32
    %46 = vector.broadcast %cst_18 : f32 to vector<16x128xf32>
    %47 = arith.maximumf %45, %46 : vector<16x128xf32>
    %c1_19 = arith.constant 1 : index
    %c0_20 = arith.constant 0 : index
    %c0_21 = arith.constant 0 : index
    %48 = vector.load %arg4[%c1_19, %c0_20, %c0_21] : memref<3x128x128xf32, #tpu.memory_space<vmem>>, vector<1x128x128xf32>
    %49 = vector.shape_cast %48 : vector<1x128x128xf32> to vector<128x128xf32>
    %cst_22 = arith.constant dense<0.000000e+00> : vector<16x128xf32>
    %50 = tpu.matmul %47, %49, %cst_22 {dimension_numbers = #tpu.dot_dimension_numbers<[1], [0], [0], [1], [0, 0, 1, 1], [], []>} : vector<16x128xf32>, vector<128x128xf32>, vector<16x128xf32> -> vector<16x128xf32>
    %c0_23 = arith.constant 0 : index
    %c0_24 = arith.constant 0 : index
    %c0_25 = arith.constant 0 : index
    %51 = vector.load %arg4[%c0_23, %c0_24, %c0_25] : memref<3x128x128xf32, #tpu.memory_space<vmem>>, vector<1x128x128xf32>
    %52 = vector.shape_cast %51 : vector<1x128x128xf32> to vector<128x128xf32>
    %cst_26 = arith.constant dense<0.000000e+00> : vector<16x128xf32>
    %53 = tpu.matmul %47, %52, %cst_26 {dimension_numbers = #tpu.dot_dimension_numbers<[1], [0], [0], [1], [0, 0, 1, 1], [], []>} : vector<16x128xf32>, vector<128x128xf32>, vector<16x128xf32> -> vector<16x128xf32>
    %54 = vector.extract_strided_slice %53 {offsets = [15, 0], sizes = [1, 128], strides = [1, 1]} : vector<16x128xf32> to vector<1x128xf32>
    %55 = vector.extract_strided_slice %53 {offsets = [0, 0], sizes = [15, 128], strides = [1, 1]} : vector<16x128xf32> to vector<15x128xf32>
    %56 = tpu.concatenate %54, %55 in 0 : vector<1x128xf32>, vector<15x128xf32> -> vector<16x128xf32>
    %cst_27 = arith.constant 0.000000e+00 : f32
    %57 = vector.broadcast %cst_27 : f32 to vector<16x128xf32>
    %58 = arith.select %18, %57, %56 : vector<16x128xi1>, vector<16x128xf32>
    %59 = arith.addf %50, %58 : vector<16x128xf32>
    %c2_28 = arith.constant 2 : index
    %c0_29 = arith.constant 0 : index
    %c0_30 = arith.constant 0 : index
    %60 = vector.load %arg4[%c2_28, %c0_29, %c0_30] : memref<3x128x128xf32, #tpu.memory_space<vmem>>, vector<1x128x128xf32>
    %61 = vector.shape_cast %60 : vector<1x128x128xf32> to vector<128x128xf32>
    %cst_31 = arith.constant dense<0.000000e+00> : vector<16x128xf32>
    %62 = tpu.matmul %47, %61, %cst_31 {dimension_numbers = #tpu.dot_dimension_numbers<[1], [0], [0], [1], [0, 0, 1, 1], [], []>} : vector<16x128xf32>, vector<128x128xf32>, vector<16x128xf32> -> vector<16x128xf32>
    %63 = vector.extract_strided_slice %62 {offsets = [1, 0], sizes = [15, 128], strides = [1, 1]} : vector<16x128xf32> to vector<15x128xf32>
    %64 = vector.extract_strided_slice %62 {offsets = [0, 0], sizes = [1, 128], strides = [1, 1]} : vector<16x128xf32> to vector<1x128xf32>
    %65 = tpu.concatenate %63, %64 in 0 : vector<15x128xf32>, vector<1x128xf32> -> vector<16x128xf32>
    %cst_32 = arith.constant 0.000000e+00 : f32
    %66 = vector.broadcast %cst_32 : f32 to vector<16x128xf32>
    %67 = arith.select %20, %66, %65 : vector<16x128xi1>, vector<16x128xf32>
    %68 = arith.addf %59, %67 : vector<16x128xf32>
    %c0_33 = arith.constant 0 : index
    %c0_34 = arith.constant 0 : index
    %69 = vector.load %arg5[%c0_33, %c0_34] : memref<1x128xf32, #tpu.memory_space<vmem>>, vector<1x128xf32>
    %70 = vector.broadcast %69 : vector<1x128xf32> to vector<16x128xf32>
    %71 = arith.addf %68, %70 : vector<16x128xf32>
    %cst_35 = arith.constant 0.000000e+00 : f32
    %72 = vector.broadcast %cst_35 : f32 to vector<16x128xf32>
    %73 = arith.maximumf %71, %72 : vector<16x128xf32>
    %c0_36 = arith.constant 0 : index
    %c0_37 = arith.constant 0 : index
    %74 = vector.load %arg6[%c0_36, %c0_37] : memref<16x128xf32, #tpu.memory_space<vmem>>, vector<16x128xf32>
    tpu.vector_store %arg6[%c0_36, %c0_37], %73 {strides = array<i32>} : memref<16x128xf32, #tpu.memory_space<vmem>>, vector<16x128xf32>,
    return
  }
  func.func @transform_0(%arg0: i32) -> (i32, i32) {
    %c0_i32 = arith.constant 0 : i32
    %c0_i32_0 = arith.constant 0 : i32
    return %arg0, %c0_i32 : i32, i32
  }
  func.func @transform_1(%arg0: i32) -> (i32, i32, i32) {
    %c0_i32 = arith.constant 0 : i32
    %c0_i32_0 = arith.constant 0 : i32
    %c0_i32_1 = arith.constant 0 : i32
    %c0_i32_2 = arith.constant 0 : i32
    return %c0_i32, %c0_i32_0, %c0_i32_1 : i32, i32, i32
  }
  func.func @transform_2(%arg0: i32) -> (i32, i32) {
    %c0_i32 = arith.constant 0 : i32
    %c0_i32_0 = arith.constant 0 : i32
    %c0_i32_1 = arith.constant 0 : i32
    return %c0_i32, %c0_i32_0 : i32, i32
  }
  func.func @transform_3(%arg0: i32) -> (i32, i32, i32) {
    %c0_i32 = arith.constant 0 : i32
    %c0_i32_0 = arith.constant 0 : i32
    %c0_i32_1 = arith.constant 0 : i32
    %c0_i32_2 = arith.constant 0 : i32
    return %c0_i32, %c0_i32_0, %c0_i32_1 : i32, i32, i32
  }
  func.func @transform_4(%arg0: i32) -> (i32, i32) {
    %c0_i32 = arith.constant 0 : i32
    %c0_i32_0 = arith.constant 0 : i32
    %c0_i32_1 = arith.constant 0 : i32
    return %c0_i32, %c0_i32_0 : i32, i32
  }
  func.func @transform_5(%arg0: i32) -> (i32, i32) {
    %c0_i32 = arith.constant 0 : i32
    %c0_i32_0 = arith.constant 0 : i32
    return %arg0, %c0_i32 : i32, i32
  }
}

</mosaic_0001>

<llo_original>
// kernel: double_conv_forward_nhwc.1
$region0: #{double_conv_forward_nhwc.1}
  #allocation0 [shape = 'u32[]', space=smem, size = 0x4, offset = 0x4, fixed_abs, tag = 'smem constant byte address 0x4 - core index']
  #allocation1 [shape = 'u32[144,128]{1,0:T(1,128)}', space=vmem, size = 0x12000, scoped, tag = 'internal scratch']
  %s0 = inlined_call_operand.vmem [shape: f32[32,64], index: 0, kind: input, shape index: {}]
  %s1 = inlined_call_operand.hbm [shape: f32[3,64,128], index: 1, kind: input, shape index: {}]
  %s2 = inlined_call_operand.vmem [shape: f32[1,128], index: 2, kind: input, shape index: {}]
  %s3 = inlined_call_operand.vmem [shape: f32[3,128,128], index: 3, kind: input, shape index: {}]
  %s4 = inlined_call_operand.vmem [shape: f32[1,128], index: 4, kind: input, shape index: {}]
  %s5 = inlined_call_operand.vmem [shape: f32[32,128], index: 5, kind: output, shape index: {}]
  %s6 = sld [smem:[#allocation0]]
  $region57: #{double_conv_forward_nhwc.1} parent=0
    _
  %s8 = ssub.s32 1, %s6
  %s9 = scalar_select 0, %s8, %s6
  $region1: #{double_conv_forward_nhwc.1} parent=0
    #allocation2 [shape = 'u8[98304]{0}', space=vmem, size = 0x18000, scoped, tag = 'input window, operand 1, single buffered']
    #allocation3 [shape = 's32[2]{0}', space=sflag, size = 0x8, scoped, tag = 'scoped memory for double_conv_forward_nhwc.1']
    %10 = vsyncpa [#allocation3], 0
    loop: start=0, step=1, limit=4
    $region2: #{double_conv_forward_nhwc.1} parent=1 // loop_pre_header
      _
    $region3: #{double_conv_forward_nhwc.1} parent=1 // loop_header
      %s12 = sphi 0, %s16
      %p13 = scmp.ge.s32.totalorder %s12, 4
      %s22 = sphi 0, %s24
      %s25 = sphi 0, %s22
      %s26 = sphi 0, %s25
      %s42 = sphi 0, %s26
      %s46 = sphi 0, %s46
      %s48 = sphi 0, %s46
      %s49 = sphi 0, %s48
      %s63 = sphi 0, %s49
      %s67 = sphi 0, %s67
      %s69 = sphi 0, %s67
      %s70 = sphi 0, %s69
      %s84 = sphi 0, %s70
      %s88 = sphi 0, %s88
      %s90 = sphi 0, %s88
      %s91 = sphi 0, %s90
      %s105 = sphi 0, %s91
      %s109 = sphi 0, %s109
      %s111 = sphi 0, %s109
      %s112 = sphi 0, %s111
      %s126 = sphi 0, %s112
      %s132 = sphi 0, %s134
      %s135 = sphi 0, %s132
      %s136 = sphi 0, %s135
      %s152 = sphi 0, %s136
    $region4: #{double_conv_forward_nhwc.1} parent=1 // loop_header_branch
      %15 = sbr.rel (%p13) target = $region8
    $region5: #{double_conv_forward_nhwc.1} parent=1 // loop_body
      %s17 = ssub.s32 %s12, 1
      %s18 = ssub.s32 %s12, 2
      %s19 = sadd.s32 %s12, 1
      %s20 = ssub.s32 %s12, %s19
      %p21 = scmp.eq.s32.totalorder %s20, 0
      %s23 = sadd.s32 %s22, 1
      %s24 = scalar_select %p21, %s22, %s23
      %p27 = pneg %p21
      %p28 = scmp.eq.s32.totalorder %s12, 1
      %p29 = por %p27, %p28
      %p30 = scmp.ne.s32.totalorder %s22, %s25
      %p31 = scmp.eq.s32.totalorder %s12, 0
      %p32 = por %p30, %p31
      %p33 = scmp.ne.s32.totalorder %s22, %s25
      %p34 = scmp.eq.s32.totalorder %s17, 1
      %p35 = por %p33, %p34
      %p36 = scmp.ne.s32.totalorder %s25, %s26
      %p37 = scmp.eq.s32.totalorder %s17, 0
      %p38 = por %p36, %p37
      %p39 = scmp.ne.s32.totalorder %s25, %s26
      %p40 = scmp.eq.s32.totalorder %s18, 1
      %p41 = por %p39, %p40
      %p43 = scmp.ne.s32.totalorder %s26, %s42
      %p44 = scmp.eq.s32.totalorder %s18, 0
      %p45 = por %p43, %p44
      %s47 = sadd.s32 %s46, 1
      %p50 = scmp.eq.s32.totalorder %s12, 1
      %p51 = scmp.ne.s32.totalorder %s46, %s48
      %p52 = scmp.eq.s32.totalorder %s12, 0
      %p53 = por %p51, %p52
      %p54 = scmp.ne.s32.totalorder %s46, %s48
      %p55 = scmp.eq.s32.totalorder %s17, 1
      %p56 = por %p54, %p55
      %p57 = scmp.ne.s32.totalorder %s48, %s49
      %p58 = scmp.eq.s32.totalorder %s17, 0
      %p59 = por %p57, %p58
      %p60 = scmp.ne.s32.totalorder %s48, %s49
      %p61 = scmp.eq.s32.totalorder %s18, 1
      %p62 = por %p60, %p61
      %p64 = scmp.ne.s32.totalorder %s49, %s63
      %p65 = scmp.eq.s32.totalorder %s18, 0
      %p66 = por %p64, %p65
      %s68 = sadd.s32 %s67, 1
      %p71 = scmp.eq.s32.totalorder %s12, 1
      %p72 = scmp.ne.s32.totalorder %s67, %s69
      %p73 = scmp.eq.s32.totalorder %s12, 0
      %p74 = por %p72, %p73
      %p75 = scmp.ne.s32.totalorder %s67, %s69
      %p76 = scmp.eq.s32.totalorder %s17, 1
      %p77 = por %p75, %p76
      %p78 = scmp.ne.s32.totalorder %s69, %s70
      %p79 = scmp.eq.s32.totalorder %s17, 0
      %p80 = por %p78, %p79
      %p81 = scmp.ne.s32.totalorder %s69, %s70
      %p82 = scmp.eq.s32.totalorder %s18, 1
      %p83 = por %p81, %p82
      %p85 = scmp.ne.s32.totalorder %s70, %s84
      %p86 = scmp.eq.s32.totalorder %s18, 0
      %p87 = por %p85, %p86
      %s89 = sadd.s32 %s88, 1
      %p92 = scmp.eq.s32.totalorder %s12, 1
      %p93 = scmp.ne.s32.totalorder %s88, %s90
      %p94 = scmp.eq.s32.totalorder %s12, 0
      %p95 = por %p93, %p94
      %p96 = scmp.ne.s32.totalorder %s88, %s90
      %p97 = scmp.eq.s32.totalorder %s17, 1
      %p98 = por %p96, %p97
      %p99 = scmp.ne.s32.totalorder %s90, %s91
      %p100 = scmp.eq.s32.totalorder %s17, 0
      %p101 = por %p99, %p100
      %p102 = scmp.ne.s32.totalorder %s90, %s91
      %p103 = scmp.eq.s32.totalorder %s18, 1
      %p104 = por %p102, %p103
      %p106 = scmp.ne.s32.totalorder %s91, %s105
      %p107 = scmp.eq.s32.totalorder %s18, 0
      %p108 = por %p106, %p107
      %s110 = sadd.s32 %s109, 1
      %p113 = scmp.eq.s32.totalorder %s12, 1
      %p114 = scmp.ne.s32.totalorder %s109, %s111
      %p115 = scmp.eq.s32.totalorder %s12, 0
      %p116 = por %p114, %p115
      %p117 = scmp.ne.s32.totalorder %s109, %s111
      %p118 = scmp.eq.s32.totalorder %s17, 1
      %p119 = por %p117, %p118
      %p120 = scmp.ne.s32.totalorder %s111, %s112
      %p121 = scmp.eq.s32.totalorder %s17, 0
      %p122 = por %p120, %p121
      %p123 = scmp.ne.s32.totalorder %s111, %s112
      %p124 = scmp.eq.s32.totalorder %s18, 1
      %p125 = por %p123, %p124
      %p127 = scmp.ne.s32.totalorder %s112, %s126
      %p128 = scmp.eq.s32.totalorder %s18, 0
      %p129 = por %p127, %p128
      %s130 = ssub.s32 %s12, %s19
      %p131 = scmp.eq.s32.totalorder %s130, 0
      %s133 = sadd.s32 %s132, 1
      %s134 = scalar_select %p131, %s132, %s133
      %p137 = pneg %p131
      %p138 = scmp.eq.s32.totalorder %s12, 1
      %p139 = por %p137, %p138
      %p140 = scmp.ne.s32.totalorder %s132, %s135
      %p141 = scmp.eq.s32.totalorder %s12, 0
      %p142 = por %p140, %p141
      %p143 = scmp.ne.s32.totalorder %s132, %s135
      %p144 = scmp.eq.s32.totalorder %s17, 1
      %p145 = por %p143, %p144
      %p146 = scmp.ne.s32.totalorder %s135, %s136
      %p147 = scmp.eq.s32.totalorder %s17, 0
      %p148 = por %p146, %p147
      %p149 = scmp.ne.s32.totalorder %s135, %s136
      %p150 = scmp.eq.s32.totalorder %s18, 1
      %p151 = por %p149, %p150
      %p153 = scmp.ne.s32.totalorder %s136, %s152
      %p154 = scmp.eq.s32.totalorder %s18, 0
      %p155 = por %p153, %p154
      %p156 = scmp.le.s32.totalorder 1, %s12
      %p157 = scmp.lt.s32.totalorder %s12, 3
      %p158 = pnand %p156, %p157
      %p159 = pneg %p158
      // Predicated region
      $region9: #{double_conv_forward_nhwc.1} parent=5 // pred_check
        _
      $region10: #{double_conv_forward_nhwc.1} parent=5 // pred_check_branch
        %161 = sbr.rel (%p158) target = $region12
      $region11: #{double_conv_forward_nhwc.1} parent=5 // pred_region
        %s162 = ssub.s32 %s12, 1
        // Predicated region
        $region13: #{double_conv_forward_nhwc.1} parent=11 // pred_check
          %p163 = pneg %p59
        $region14: #{double_conv_forward_nhwc.1} parent=11 // pred_check_branch
          %165 = sbr.rel (%p163) target = $region16
        $region15: #{double_conv_forward_nhwc.1} parent=11 // pred_region
          %s167 = ssub.s32 3072, 3072
          %168 = vsyncadd [#allocation3], %s167
          %s169 = sshll.u32 [#allocation2], 4
          %s170 = int_to_ptr.vmem [resolvable:$true] %s169
          %175 = dma.hbm_to_vmem [thread:$0]  %s1, 3072, %s170, [#allocation3], 128, 128, 8
        $region16: #{double_conv_forward_nhwc.1} parent=11 // pred_fallthru
          _
        // Predicated region
        $region17: #{double_conv_forward_nhwc.1} parent=11 // pred_check
          %p176 = pneg %p80
        $region18: #{double_conv_forward_nhwc.1} parent=11 // pred_check_branch
          %178 = sbr.rel (%p176) target = $region20
        $region19: #{double_conv_forward_nhwc.1} parent=11 // pred_region
          _
        $region20: #{double_conv_forward_nhwc.1} parent=11 // pred_fallthru
          _
        // Predicated region
        $region21: #{double_conv_forward_nhwc.1} parent=11 // pred_check
          %p179 = pneg %p101
        $region22: #{double_conv_forward_nhwc.1} parent=11 // pred_check_branch
          %181 = sbr.rel (%p179) target = $region24
        $region23: #{double_conv_forward_nhwc.1} parent=11 // pred_region
          _
        $region24: #{double_conv_forward_nhwc.1} parent=11 // pred_fallthru
          _
        // Predicated region
        $region25: #{double_conv_forward_nhwc.1} parent=11 // pred_check
          %p182 = pneg %p122
        $region26: #{double_conv_forward_nhwc.1} parent=11 // pred_check_branch
          %184 = sbr.rel (%p182) target = $region28
        $region27: #{double_conv_forward_nhwc.1} parent=11 // pred_region
          _
        $region28: #{double_conv_forward_nhwc.1} parent=11 // pred_fallthru
          _
      $region12: #{double_conv_forward_nhwc.1} parent=5 // pred_fallthru
        _
      %p185 = scmp.lt.s32.totalorder %s12, 2
      // Predicated region
      $region29: #{double_conv_forward_nhwc.1} parent=5 // pred_check
        %p186 = pneg %p185
      $region30: #{double_conv_forward_nhwc.1} parent=5 // pred_check_branch
        %188 = sbr.rel (%p186) target = $region32
      $region31: #{double_conv_forward_nhwc.1} parent=5 // pred_region
        // Predicated region
        $region33: #{double_conv_forward_nhwc.1} parent=31 // pred_check
          %p189 = pneg %p32
        $region34: #{double_conv_forward_nhwc.1} parent=31 // pred_check_branch
          %191 = sbr.rel (%p189) target = $region36
        $region35: #{double_conv_forward_nhwc.1} parent=31 // pred_region
          %s192 = smul.u32 2, %s12
          %p193 = scmp.lt.s32.totalorder %s192, 3
          %s194 = scalar_select %p193, %s192, 3
          %s195 = smul.addr %s194, 8
          %s196 = scalar_lea.vmem %s0, %s195
          %s197 = smul.u32 2, %s12
        $region36: #{double_conv_forward_nhwc.1} parent=31 // pred_fallthru
          _
      $region32: #{double_conv_forward_nhwc.1} parent=5 // pred_fallthru
        _
      %p198 = scmp.le.s32.totalorder 1, %s12
      %p199 = scmp.lt.s32.totalorder %s12, 3
      %p200 = pnand %p198, %p199
      %p201 = pneg %p200
      // Predicated region
      $region37: #{double_conv_forward_nhwc.1} parent=5 // pred_check
        _
      $region38: #{double_conv_forward_nhwc.1} parent=5 // pred_check_branch
        %203 = sbr.rel (%p200) target = $region40
      $region39: #{double_conv_forward_nhwc.1} parent=5 // pred_region
        %s204 = ssub.s32 %s12, 1
        // Predicated region
        $region41: #{double_conv_forward_nhwc.1} parent=39 // pred_check
          %p205 = pneg %p59
        $region42: #{double_conv_forward_nhwc.1} parent=39 // pred_check_branch
          %207 = sbr.rel (%p205) target = $region44
        $region43: #{double_conv_forward_nhwc.1} parent=39 // pred_region
          %208 = dma.done [#allocation3], 3072
        $region44: #{double_conv_forward_nhwc.1} parent=39 // pred_fallthru
          _
        %s209 = smul.u32 2, %s17
        %p210 = scmp.lt.s32.totalorder %s209, 3
        %s211 = scalar_select %p210, %s209, 3
        %s212 = smul.addr %s211, 8
        %s213 = scalar_lea.vmem %s0, %s212
        %p214 = pneg %p38
        %p215 = pneg %p35
        %p216 = pneg %p59
        %p217 = pneg %p56
        %p218 = pneg %p80
        %p219 = pneg %p77
        %p220 = pneg %p101
        %p221 = pneg %p98
        %p222 = pneg %p122
        %p223 = pneg %p119
        %p224 = pneg %p148
        %p225 = pneg %p145
        %s226 = smul.u32 2, %s17
        %p227 = scmp.lt.s32.totalorder %s226, 3
        %s228 = scalar_select %p227, %s226, 3
        %s229 = smul.addr %s228, 8
        %s230 = scalar_lea.vmem %s5, %s229
        %s231 = smul.u32 2, %s17
        %p232 = scmp.lt.s32.totalorder %s231, 3
        %s233 = scalar_select %p232, %s231, 3
        %s234 = smul.addr %s233, 8
        %s235 = scalar_lea.vmem %s0, %s234
        %s236 = smul.u32 2, %s17
        %s237 = smul.u32 2, %s17
        %p238 = scmp.lt.s32.totalorder %s237, 3
        %s239 = scalar_select %p238, %s237, 3
        %s240 = smul.addr %s239, 8
        %s241 = scalar_lea.vmem %s5, %s240
        %s242 = smul.u32 2, %s17
        %v243 = vlaneseq
        %v244 = vshrl.u32 %v243, 7
        %v245 = vadd.s32 %v244, 8
        %vm246 = vcmp.lt.s32.totalorder %v244, 0
        %v247 = vsub.s32 0, %v244
        %v248 = vsel %vm246, %v247, %v244
        %v249 = vshrl.u32 %v248, 4
        %v250 = vand.u32 %v248, 15
        %v251 = vsub.s32 0, %v250
        %v252 = vsel %vm246, %v251, %v250
        %vm253 = vcmp.lt.s32.totalorder %v245, 0
        %v254 = vsub.s32 0, %v245
        %v255 = vsel %vm253, %v254, %v245
        %v256 = vshrl.u32 %v255, 4
        %v257 = vand.u32 %v255, 15
        %v258 = vsub.s32 0, %v257
        %v259 = vsel %vm253, %v258, %v257
        %vm260 = vcmp.ne.s32.totalorder %v252, 0
        %vm261 = vcmp.ne.s32.totalorder %v259, 0
        %vm262 = vcmp.lt.s32.totalorder %v252, 0
        %vm263 = vcmp.lt.s32.totalorder %v259, 0
        %vm264 = vmand %vm262, %vm260
        %vm265 = vmand %vm263, %vm261
        %v266 = vadd.s32 %v252, 16
        %v267 = vadd.s32 %v259, 16
        %v268 = vsel %vm264, %v266, %v252
        %v269 = vsel %vm265, %v267, %v259
        %vm270 = vcmp.eq.s32.totalorder %v268, 0
        %vm271 = vcmp.eq.s32.totalorder %v269, 0
        %vm272 = vcmp.eq.s32.totalorder %v268, 15
        %vm273 = vcmp.eq.s32.totalorder %v269, 15
        %v274 = vld [vmem:[%s235] sm:$0xff]
        %v275 = vld [vmem:[%s235 + $0x8] sm:$0xff]
        %s276 = scalar_lea.vmem [#allocation2], 64
        %v277 = vld [vmem:[%s276] sm:$0xff]
        %v278 = vld [vmem:[%s276 + $0x8] sm:$0xff]
        %v279 = vld [vmem:[%s276 + $0x10] sm:$0xff]
        %v280 = vld [vmem:[%s276 + $0x18] sm:$0xff]
        %v281 = vld [vmem:[%s276 + $0x20] sm:$0xff]
        %v282 = vld [vmem:[%s276 + $0x28] sm:$0xff]
        %v283 = vld [vmem:[%s276 + $0x30] sm:$0xff]
        %v284 = vld [vmem:[%s276 + $0x38] sm:$0xff]
        %v285 = vld [vmem:[#allocation2] sm:$0xff]
        %v286 = vld [vmem:[#allocation2 + $0x8] sm:$0xff]
        %v287 = vld [vmem:[#allocation2 + $0x10] sm:$0xff]
        %v288 = vld [vmem:[#allocation2 + $0x18] sm:$0xff]
        %v289 = vld [vmem:[#allocation2 + $0x20] sm:$0xff]
        %v290 = vld [vmem:[#allocation2 + $0x28] sm:$0xff]
        %v291 = vld [vmem:[#allocation2 + $0x30] sm:$0xff]
        %v292 = vld [vmem:[#allocation2 + $0x38] sm:$0xff]
        %vm293 = vcmask 523264
        %v295 = vsel %vm293, %v274, 0
        %v298 = vsel %vm293, %v275, 0
        %300 = vmatprep.subr.mxu0 0.0
        %301 = vmatpush1.msra.mxu0 %v285
        %302 = vmatprep.subr.mxu0 0.0
        %303 = vmatpush1.msra.mxu0 %v286
        %304 = vmatprep.subr.mxu0 0.0
        %305 = vmatpush1.msra.mxu0 %v287
        %306 = vmatprep.subr.mxu0 0.0
        %307 = vmatpush1.msra.mxu0 %v288
        %308 = vmatprep.subr.mxu0 0.0
        %309 = vmatpush1.msra.mxu0 %v289
        %310 = vmatprep.subr.mxu0 0.0
        %311 = vmatpush1.msra.mxu0 %v290
        %312 = vmatprep.subr.mxu0 0.0
        %313 = vmatpush1.msra.mxu0 %v291
        %314 = vmatprep.subr.mxu0 0.0
        %315 = vmatpush1.msra.mxu0 %v292
        %316 = vmatprep.subr.mxu0 0.0
        %317 = vmatpush1.msra.mxu0 0.0
        %318 = vmatprep.subr.mxu0 0.0
        %319 = vmatpush1.msra.mxu0 0.0
        %320 = vmatprep.subr.mxu0 0.0
        %321 = vmatpush1.msra.mxu0 0.0
        %322 = vmatprep.subr.mxu0 0.0
        %323 = vmatpush1.msra.mxu0 0.0
        %324 = vmatprep.subr.mxu0 0.0
        %325 = vmatpush1.msra.mxu0 0.0
        %326 = vmatprep.subr.mxu0 0.0
        %327 = vmatpush1.msra.mxu0 0.0
        %328 = vmatprep.subr.mxu0 0.0
        %329 = vmatpush1.msra.mxu0 0.0
        %330 = vmatprep.subr.mxu0 0.0
        %331 = vmatpush1.msra.mxu0 0.0
        %332 = vmatprep.subr.mxu0 0.0
        %333 = vmatpush1.msra.mxu0 0.0
        %334 = vmatprep.subr.mxu0 0.0
        %335 = vmatpush1.msra.mxu0 0.0
        %336 = vmatprep.subr.mxu0 0.0
        %337 = vmatpush1.msra.mxu0 0.0
        %338 = vmatprep.subr.mxu0 0.0
        %339 = vmatpush1.msra.mxu0 0.0
        %340 = vmatprep.subr.mxu0 0.0
        %341 = vmatpush1.msra.mxu0 0.0
        %342 = vmatprep.subr.mxu0 0.0
        %343 = vmatpush1.msra.mxu0 0.0
        %344 = vmatprep.subr.mxu0 0.0
        %345 = vmatpush1.msra.mxu0 0.0
        %346 = vmatprep.subr.mxu0 0.0
        %347 = vmatpush1.msra.mxu0 0.0
        %348 = vmatprep.subr.mxu0 0.0
        %349 = vmatpush1.msra.mxu0 0.0
        %350 = vmatprep.subr.mxu0 0.0
        %351 = vmatpush1.msra.mxu0 0.0
        %352 = vmatprep.subr.mxu0 0.0
        %353 = vmatpush1.msra.mxu0 0.0
        %354 = vmatprep.subr.mxu0 0.0
        %355 = vmatpush1.msra.mxu0 0.0
        %356 = vmatprep.subr.mxu0 0.0
        %357 = vmatpush1.msra.mxu0 0.0
        %358 = vmatprep.subr.mxu0 0.0
        %359 = vmatpush1.msra.mxu0 0.0
        %360 = vmatprep.subr.mxu0 0.0
        %361 = vmatpush1.msra.mxu0 0.0
        %362 = vmatprep.subr.mxu0 0.0
        %363 = vmatpush1.msra.mxu0 0.0
        %364 = vmatprep.mubr.f32.mxu0 0.0
        %365 = vmatmul.mubr.f32.gmra.mrb[0].mxu0 %v295
        %v366 = vpop.f32.mrb[0].mxu0
        %v367 = vadd.f32 0.0, %v366
        %v368 = vpop.f32.mrb[0].mxu0
        %369 = vmatprep.mubr.f32.mxu0 0.0
        %370 = vmatmul.mubr.f32.gmra.mrb[0].mxu0 %v298
        %v371 = vpop.f32.mrb[0].mxu0
        %v372 = vadd.f32 0.0, %v371
        %v373 = vpop.f32.mrb[0].mxu0
        %374 = vdwg.mxu0
        %v376 = vrot.slane %v372, 7
        %vm379 = vcmask 1040384
        %v380 = vrot.slane %v367, 7
        %v381 = vsel %vm379, %v380, %v376
        %v384 = vsel %vm379, %v376, %v380
        %v385 = vsel %vm270, 0.0, %v384
        %v386 = vsel %vm271, 0.0, %v381
        %387 = vmatprep.subr.mxu0 0.0
        %388 = vmatpush1.msra.mxu0 %v277
        %389 = vmatprep.subr.mxu0 0.0
        %390 = vmatpush1.msra.mxu0 %v278
        %391 = vmatprep.subr.mxu0 0.0
        %392 = vmatpush1.msra.mxu0 %v279
        %393 = vmatprep.subr.mxu0 0.0
        %394 = vmatpush1.msra.mxu0 %v280
        %395 = vmatprep.subr.mxu0 0.0
        %396 = vmatpush1.msra.mxu0 %v281
        %397 = vmatprep.subr.mxu0 0.0
        %398 = vmatpush1.msra.mxu0 %v282
        %399 = vmatprep.subr.mxu0 0.0
        %400 = vmatpush1.msra.mxu0 %v283
        %401 = vmatprep.subr.mxu0 0.0
        %402 = vmatpush1.msra.mxu0 %v284
        %403 = vmatprep.subr.mxu0 0.0
        %404 = vmatpush1.msra.mxu0 0.0
        %405 = vmatprep.subr.mxu0 0.0
        %406 = vmatpush1.msra.mxu0 0.0
        %407 = vmatprep.subr.mxu0 0.0
        %408 = vmatpush1.msra.mxu0 0.0
        %409 = vmatprep.subr.mxu0 0.0
        %410 = vmatpush1.msra.mxu0 0.0
        %411 = vmatprep.subr.mxu0 0.0
        %412 = vmatpush1.msra.mxu0 0.0
        %413 = vmatprep.subr.mxu0 0.0
        %414 = vmatpush1.msra.mxu0 0.0
        %415 = vmatprep.subr.mxu0 0.0
        %416 = vmatpush1.msra.mxu0 0.0
        %417 = vmatprep.subr.mxu0 0.0
        %418 = vmatpush1.msra.mxu0 0.0
        %419 = vmatprep.subr.mxu0 0.0
        %420 = vmatpush1.msra.mxu0 0.0
        %421 = vmatprep.subr.mxu0 0.0
        %422 = vmatpush1.msra.mxu0 0.0
        %423 = vmatprep.subr.mxu0 0.0
        %424 = vmatpush1.msra.mxu0 0.0
        %425 = vmatprep.subr.mxu0 0.0
        %426 = vmatpush1.msra.mxu0 0.0
        %427 = vmatprep.subr.mxu0 0.0
        %428 = vmatpush1.msra.mxu0 0.0
        %429 = vmatprep.subr.mxu0 0.0
        %430 = vmatpush1.msra.mxu0 0.0
        %431 = vmatprep.subr.mxu0 0.0
        %432 = vmatpush1.msra.mxu0 0.0
        %433 = vmatprep.subr.mxu0 0.0
        %434 = vmatpush1.msra.mxu0 0.0
        %435 = vmatprep.subr.mxu0 0.0
        %436 = vmatpush1.msra.mxu0 0.0
        %437 = vmatprep.subr.mxu0 0.0
        %438 = vmatpush1.msra.mxu0 0.0
        %439 = vmatprep.subr.mxu0 0.0
        %440 = vmatpush1.msra.mxu0 0.0
        %441 = vmatprep.subr.mxu0 0.0
        %442 = vmatpush1.msra.mxu0 0.0
        %443 = vmatprep.subr.mxu0 0.0
        %444 = vmatpush1.msra.mxu0 0.0
        %445 = vmatprep.subr.mxu0 0.0
        %446 = vmatpush1.msra.mxu0 0.0
        %447 = vmatprep.subr.mxu0 0.0
        %448 = vmatpush1.msra.mxu0 0.0
        %449 = vmatprep.subr.mxu0 0.0
        %450 = vmatpush1.msra.mxu0 0.0
        %451 = vmatprep.mubr.f32.mxu0 0.0
        %452 = vmatmul.mubr.f32.gmra.mrb[0].mxu0 %v295
        %v453 = vpop.f32.mrb[0].mxu0
        %v454 = vadd.f32 %v385, %v453
        %v455 = vpop.f32.mrb[0].mxu0
        %456 = vmatprep.mubr.f32.mxu0 0.0
        %457 = vmatmul.mubr.f32.gmra.mrb[0].mxu0 %v298
        %v458 = vpop.f32.mrb[0].mxu0
        %v459 = vadd.f32 %v386, %v458
        %v460 = vpop.f32.mrb[0].mxu0
        %461 = vdwg.mxu0
        %s462 = scalar_lea.vmem [#allocation2], 128
        %v463 = vld [vmem:[%s462] sm:$0xff]
        %v464 = vld [vmem:[%s462 + $0x8] sm:$0xff]
        %v465 = vld [vmem:[%s462 + $0x10] sm:$0xff]
        %v466 = vld [vmem:[%s462 + $0x18] sm:$0xff]
        %v467 = vld [vmem:[%s462 + $0x20] sm:$0xff]
        %v468 = vld [vmem:[%s462 + $0x28] sm:$0xff]
        %v469 = vld [vmem:[%s462 + $0x30] sm:$0xff]
        %v470 = vld [vmem:[%s462 + $0x38] sm:$0xff]
        %471 = vmatprep.subr.mxu0 0.0
        %472 = vmatpush1.msra.mxu0 %v463
        %473 = vmatprep.subr.mxu0 0.0
        %474 = vmatpush1.msra.mxu0 %v464
        %475 = vmatprep.subr.mxu0 0.0
        %476 = vmatpush1.msra.mxu0 %v465
        %477 = vmatprep.subr.mxu0 0.0
        %478 = vmatpush1.msra.mxu0 %v466
        %479 = vmatprep.subr.mxu0 0.0
        %480 = vmatpush1.msra.mxu0 %v467
        %481 = vmatprep.subr.mxu0 0.0
        %482 = vmatpush1.msra.mxu0 %v468
        %483 = vmatprep.subr.mxu0 0.0
        %484 = vmatpush1.msra.mxu0 %v469
        %485 = vmatprep.subr.mxu0 0.0
        %486 = vmatpush1.msra.mxu0 %v470
        %487 = vmatprep.subr.mxu0 0.0
        %488 = vmatpush1.msra.mxu0 0.0
        %489 = vmatprep.subr.mxu0 0.0
        %490 = vmatpush1.msra.mxu0 0.0
        %491 = vmatprep.subr.mxu0 0.0
        %492 = vmatpush1.msra.mxu0 0.0
        %493 = vmatprep.subr.mxu0 0.0
        %494 = vmatpush1.msra.mxu0 0.0
        %495 = vmatprep.subr.mxu0 0.0
        %496 = vmatpush1.msra.mxu0 0.0
        %497 = vmatprep.subr.mxu0 0.0
        %498 = vmatpush1.msra.mxu0 0.0
        %499 = vmatprep.subr.mxu0 0.0
        %500 = vmatpush1.msra.mxu0 0.0
        %501 = vmatprep.subr.mxu0 0.0
        %502 = vmatpush1.msra.mxu0 0.0
        %503 = vmatprep.subr.mxu0 0.0
        %504 = vmatpush1.msra.mxu0 0.0
        %505 = vmatprep.subr.mxu0 0.0
        %506 = vmatpush1.msra.mxu0 0.0
        %507 = vmatprep.subr.mxu0 0.0
        %508 = vmatpush1.msra.mxu0 0.0
        %509 = vmatprep.subr.mxu0 0.0
        %510 = vmatpush1.msra.mxu0 0.0
        %511 = vmatprep.subr.mxu0 0.0
        %512 = vmatpush1.msra.mxu0 0.0
        %513 = vmatprep.subr.mxu0 0.0
        %514 = vmatpush1.msra.mxu0 0.0
        %515 = vmatprep.subr.mxu0 0.0
        %516 = vmatpush1.msra.mxu0 0.0
        %517 = vmatprep.subr.mxu0 0.0
        %518 = vmatpush1.msra.mxu0 0.0
        %519 = vmatprep.subr.mxu0 0.0
        %520 = vmatpush1.msra.mxu0 0.0
        %521 = vmatprep.subr.mxu0 0.0
        %522 = vmatpush1.msra.mxu0 0.0
        %523 = vmatprep.subr.mxu0 0.0
        %524 = vmatpush1.msra.mxu0 0.0
        %525 = vmatprep.subr.mxu0 0.0
        %526 = vmatpush1.msra.mxu0 0.0
        %527 = vmatprep.subr.mxu0 0.0
        %528 = vmatpush1.msra.mxu0 0.0
        %529 = vmatprep.subr.mxu0 0.0
        %530 = vmatpush1.msra.mxu0 0.0
        %531 = vmatprep.subr.mxu0 0.0
        %532 = vmatpush1.msra.mxu0 0.0
        %533 = vmatprep.subr.mxu0 0.0
        %534 = vmatpush1.msra.mxu0 0.0
        %535 = vmatprep.mubr.f32.mxu0 0.0
        %536 = vmatmul.mubr.f32.gmra.mrb[0].mxu0 %v295
        %v537 = vpop.f32.mrb[0].mxu0
        %v538 = vadd.f32 0.0, %v537
        %v539 = vpop.f32.mrb[0].mxu0
        %540 = vmatprep.mubr.f32.mxu0 0.0
        %541 = vmatmul.mubr.f32.gmra.mrb[0].mxu0 %v298
        %v542 = vpop.f32.mrb[0].mxu0
        %v543 = vadd.f32 0.0, %v542
        %v544 = vpop.f32.mrb[0].mxu0
        %545 = vdwg.mxu0
        %vm548 = vcmask 1046528
        %v549 = vrot.slane %v538, 1
        %v550 = vrot.slane %v543, 1
        %v551 = vsel %vm548, %v549, %v550
        %v555 = vsel %vm548, %v550, %v549
        %v556 = vsel %vm272, 0.0, %v551
        %v557 = vsel %vm273, 0.0, %v555
        %v558 = vadd.f32 %v454, %v556
        %v559 = vadd.f32 %v459, %v557
        %v560 = vld [vmem:[%s2] sm:$0x1]
        %v562 = vlaneseq
        %v563 = vshrl.u32 %v562, 7
        %v564 = vsub.s32 0, %v563
        %v565 = vrot.slane %v560, %v564
        %v567 = vadd.f32 %v558, %v565
        %v568 = vadd.f32 %v559, %v565
        %v569 = vmax.f32 %v567, 0.0
        %v570 = vmax.f32 %v568, 0.0
        %s571 = scalar_lea.vmem %s3, 128
        %v572 = vld [vmem:[%s571] sm:$0xff]
        %v573 = vld [vmem:[%s571 + $0x8] sm:$0xff]
        %v574 = vld [vmem:[%s571 + $0x10] sm:$0xff]
        %v575 = vld [vmem:[%s571 + $0x18] sm:$0xff]
        %v576 = vld [vmem:[%s571 + $0x20] sm:$0xff]
        %v577 = vld [vmem:[%s571 + $0x28] sm:$0xff]
        %v578 = vld [vmem:[%s571 + $0x30] sm:$0xff]
        %v579 = vld [vmem:[%s571 + $0x38] sm:$0xff]
        %v580 = vld [vmem:[%s571 + $0x40] sm:$0xff]
        %v581 = vld [vmem:[%s571 + $0x48] sm:$0xff]
        %v582 = vld [vmem:[%s571 + $0x50] sm:$0xff]
        %v583 = vld [vmem:[%s571 + $0x58] sm:$0xff]
        %v584 = vld [vmem:[%s571 + $0x60] sm:$0xff]
        %v585 = vld [vmem:[%s571 + $0x68] sm:$0xff]
        %v586 = vld [vmem:[%s571 + $0x70] sm:$0xff]
        %v587 = vld [vmem:[%s571 + $0x78] sm:$0xff]
        %v588 = vld [vmem:[%s3] sm:$0xff]
        %v589 = vld [vmem:[%s3 + $0x8] sm:$0xff]
        %v590 = vld [vmem:[%s3 + $0x10] sm:$0xff]
        %v591 = vld [vmem:[%s3 + $0x18] sm:$0xff]
        %v592 = vld [vmem:[%s3 + $0x20] sm:$0xff]
        %v593 = vld [vmem:[%s3 + $0x28] sm:$0xff]
        %v594 = vld [vmem:[%s3 + $0x30] sm:$0xff]
        %v595 = vld [vmem:[%s3 + $0x38] sm:$0xff]
        %v596 = vld [vmem:[%s3 + $0x40] sm:$0xff]
        %v597 = vld [vmem:[%s3 + $0x48] sm:$0xff]
        %v598 = vld [vmem:[%s3 + $0x50] sm:$0xff]
        %v599 = vld [vmem:[%s3 + $0x58] sm:$0xff]
        %v600 = vld [vmem:[%s3 + $0x60] sm:$0xff]
        %v601 = vld [vmem:[%s3 + $0x68] sm:$0xff]
        %v602 = vld [vmem:[%s3 + $0x70] sm:$0xff]
        %v603 = vld [vmem:[%s3 + $0x78] sm:$0xff]
        %604 = vmatprep.subr.mxu0 0.0
        %605 = vmatpush1.msra.mxu0 %v588
        %606 = vmatprep.subr.mxu0 0.0
        %607 = vmatpush1.msra.mxu0 %v589
        %608 = vmatprep.subr.mxu0 0.0
        %609 = vmatpush1.msra.mxu0 %v590
        %610 = vmatprep.subr.mxu0 0.0
        %611 = vmatpush1.msra.mxu0 %v591
        %612 = vmatprep.subr.mxu0 0.0
        %613 = vmatpush1.msra.mxu0 %v592
        %614 = vmatprep.subr.mxu0 0.0
        %615 = vmatpush1.msra.mxu0 %v593
        %616 = vmatprep.subr.mxu0 0.0
        %617 = vmatpush1.msra.mxu0 %v594
        %618 = vmatprep.subr.mxu0 0.0
        %619 = vmatpush1.msra.mxu0 %v595
        %620 = vmatprep.subr.mxu0 0.0
        %621 = vmatpush1.msra.mxu0 %v596
        %622 = vmatprep.subr.mxu0 0.0
        %623 = vmatpush1.msra.mxu0 %v597
        %624 = vmatprep.subr.mxu0 0.0
        %625 = vmatpush1.msra.mxu0 %v598
        %626 = vmatprep.subr.mxu0 0.0
        %627 = vmatpush1.msra.mxu0 %v599
        %628 = vmatprep.subr.mxu0 0.0
        %629 = vmatpush1.msra.mxu0 %v600
        %630 = vmatprep.subr.mxu0 0.0
        %631 = vmatpush1.msra.mxu0 %v601
        %632 = vmatprep.subr.mxu0 0.0
        %633 = vmatpush1.msra.mxu0 %v602
        %634 = vmatprep.subr.mxu0 0.0
        %635 = vmatpush1.msra.mxu0 %v603
        %636 = vmatprep.subr.mxu0 0.0
        %637 = vmatpush1.msra.mxu0 0.0
        %638 = vmatprep.subr.mxu0 0.0
        %639 = vmatpush1.msra.mxu0 0.0
        %640 = vmatprep.subr.mxu0 0.0
        %641 = vmatpush1.msra.mxu0 0.0
        %642 = vmatprep.subr.mxu0 0.0
        %643 = vmatpush1.msra.mxu0 0.0
        %644 = vmatprep.subr.mxu0 0.0
        %645 = vmatpush1.msra.mxu0 0.0
        %646 = vmatprep.subr.mxu0 0.0
        %647 = vmatpush1.msra.mxu0 0.0
        %648 = vmatprep.subr.mxu0 0.0
        %649 = vmatpush1.msra.mxu0 0.0
        %650 = vmatprep.subr.mxu0 0.0
        %651 = vmatpush1.msra.mxu0 0.0
        %652 = vmatprep.subr.mxu0 0.0
        %653 = vmatpush1.msra.mxu0 0.0
        %654 = vmatprep.subr.mxu0 0.0
        %655 = vmatpush1.msra.mxu0 0.0
        %656 = vmatprep.subr.mxu0 0.0
        %657 = vmatpush1.msra.mxu0 0.0
        %658 = vmatprep.subr.mxu0 0.0
        %659 = vmatpush1.msra.mxu0 0.0
        %660 = vmatprep.subr.mxu0 0.0
        %661 = vmatpush1.msra.mxu0 0.0
        %662 = vmatprep.subr.mxu0 0.0
        %663 = vmatpush1.msra.mxu0 0.0
        %664 = vmatprep.subr.mxu0 0.0
        %665 = vmatpush1.msra.mxu0 0.0
        %666 = vmatprep.subr.mxu0 0.0
        %667 = vmatpush1.msra.mxu0 0.0
        %668 = vmatprep.mubr.f32.mxu0 0.0
        %669 = vmatmul.mubr.f32.gmra.mrb[0].mxu0 %v569
        %v670 = vpop.f32.mrb[0].mxu0
        %v671 = vadd.f32 0.0, %v670
        %v672 = vpop.f32.mrb[0].mxu0
        %673 = vmatprep.mubr.f32.mxu0 0.0
        %674 = vmatmul.mubr.f32.gmra.mrb[0].mxu0 %v570
        %v675 = vpop.f32.mrb[0].mxu0
        %v676 = vadd.f32 0.0, %v675
        %v677 = vpop.f32.mrb[0].mxu0
        %678 = vdwg.mxu0
        %v680 = vrot.slane %v676, 7
        %v683 = vrot.slane %v671, 7
        %v684 = vsel %vm379, %v683, %v680
        %v687 = vsel %vm379, %v680, %v683
        %v688 = vsel %vm270, 0.0, %v687
        %v689 = vsel %vm271, 0.0, %v684
        %690 = vmatprep.subr.mxu0 0.0
        %691 = vmatpush1.msra.mxu0 %v572
        %692 = vmatprep.subr.mxu0 0.0
        %693 = vmatpush1.msra.mxu0 %v573
        %694 = vmatprep.subr.mxu0 0.0
        %695 = vmatpush1.msra.mxu0 %v574
        %696 = vmatprep.subr.mxu0 0.0
        %697 = vmatpush1.msra.mxu0 %v575
        %698 = vmatprep.subr.mxu0 0.0
        %699 = vmatpush1.msra.mxu0 %v576
        %700 = vmatprep.subr.mxu0 0.0
        %701 = vmatpush1.msra.mxu0 %v577
        %702 = vmatprep.subr.mxu0 0.0
        %703 = vmatpush1.msra.mxu0 %v578
        %704 = vmatprep.subr.mxu0 0.0
        %705 = vmatpush1.msra.mxu0 %v579
        %706 = vmatprep.subr.mxu0 0.0
        %707 = vmatpush1.msra.mxu0 %v580
        %708 = vmatprep.subr.mxu0 0.0
        %709 = vmatpush1.msra.mxu0 %v581
        %710 = vmatprep.subr.mxu0 0.0
        %711 = vmatpush1.msra.mxu0 %v582
        %712 = vmatprep.subr.mxu0 0.0
        %713 = vmatpush1.msra.mxu0 %v583
        %714 = vmatprep.subr.mxu0 0.0
        %715 = vmatpush1.msra.mxu0 %v584
        %716 = vmatprep.subr.mxu0 0.0
        %717 = vmatpush1.msra.mxu0 %v585
        %718 = vmatprep.subr.mxu0 0.0
        %719 = vmatpush1.msra.mxu0 %v586
        %720 = vmatprep.subr.mxu0 0.0
        %721 = vmatpush1.msra.mxu0 %v587
        %722 = vmatprep.subr.mxu0 0.0
        %723 = vmatpush1.msra.mxu0 0.0
        %724 = vmatprep.subr.mxu0 0.0
        %725 = vmatpush1.msra.mxu0 0.0
        %726 = vmatprep.subr.mxu0 0.0
        %727 = vmatpush1.msra.mxu0 0.0
        %728 = vmatprep.subr.mxu0 0.0
        %729 = vmatpush1.msra.mxu0 0.0
        %730 = vmatprep.subr.mxu0 0.0
        %731 = vmatpush1.msra.mxu0 0.0
        %732 = vmatprep.subr.mxu0 0.0
        %733 = vmatpush1.msra.mxu0 0.0
        %734 = vmatprep.subr.mxu0 0.0
        %735 = vmatpush1.msra.mxu0 0.0
        %736 = vmatprep.subr.mxu0 0.0
        %737 = vmatpush1.msra.mxu0 0.0
        %738 = vmatprep.subr.mxu0 0.0
        %739 = vmatpush1.msra.mxu0 0.0
        %740 = vmatprep.subr.mxu0 0.0
        %741 = vmatpush1.msra.mxu0 0.0
        %742 = vmatprep.subr.mxu0 0.0
        %743 = vmatpush1.msra.mxu0 0.0
        %744 = vmatprep.subr.mxu0 0.0
        %745 = vmatpush1.msra.mxu0 0.0
        %746 = vmatprep.subr.mxu0 0.0
        %747 = vmatpush1.msra.mxu0 0.0
        %748 = vmatprep.subr.mxu0 0.0
        %749 = vmatpush1.msra.mxu0 0.0
        %750 = vmatprep.subr.mxu0 0.0
        %751 = vmatpush1.msra.mxu0 0.0
        %752 = vmatprep.subr.mxu0 0.0
        %753 = vmatpush1.msra.mxu0 0.0
        %754 = vmatprep.mubr.f32.mxu0 0.0
        %755 = vmatmul.mubr.f32.gmra.mrb[0].mxu0 %v569
        %v756 = vpop.f32.mrb[0].mxu0
        %v757 = vadd.f32 %v688, %v756
        %v758 = vpop.f32.mrb[0].mxu0
        %759 = vmatprep.mubr.f32.mxu0 0.0
        %760 = vmatmul.mubr.f32.gmra.mrb[0].mxu0 %v570
        %v761 = vpop.f32.mrb[0].mxu0
        %v762 = vadd.f32 %v689, %v761
        %v763 = vpop.f32.mrb[0].mxu0
        %764 = vdwg.mxu0
        %s765 = scalar_lea.vmem %s3, 256
        %v766 = vld [vmem:[%s765] sm:$0xff]
        %v767 = vld [vmem:[%s765 + $0x8] sm:$0xff]
        %v768 = vld [vmem:[%s765 + $0x10] sm:$0xff]
        %v769 = vld [vmem:[%s765 + $0x18] sm:$0xff]
        %v770 = vld [vmem:[%s765 + $0x20] sm:$0xff]
        %v771 = vld [vmem:[%s765 + $0x28] sm:$0xff]
        %v772 = vld [vmem:[%s765 + $0x30] sm:$0xff]
        %v773 = vld [vmem:[%s765 + $0x38] sm:$0xff]
        %v774 = vld [vmem:[%s765 + $0x40] sm:$0xff]
        %v775 = vld [vmem:[%s765 + $0x48] sm:$0xff]
        %v776 = vld [vmem:[%s765 + $0x50] sm:$0xff]
        %v777 = vld [vmem:[%s765 + $0x58] sm:$0xff]
        %v778 = vld [vmem:[%s765 + $0x60] sm:$0xff]
        %v779 = vld [vmem:[%s765 + $0x68] sm:$0xff]
        %v780 = vld [vmem:[%s765 + $0x70] sm:$0xff]
        %v781 = vld [vmem:[%s765 + $0x78] sm:$0xff]
        %782 = vmatprep.subr.mxu0 0.0
        %783 = vmatpush1.msra.mxu0 %v766
        %784 = vmatprep.subr.mxu0 0.0
        %785 = vmatpush1.msra.mxu0 %v767
        %786 = vmatprep.subr.mxu0 0.0
        %787 = vmatpush1.msra.mxu0 %v768
        %788 = vmatprep.subr.mxu0 0.0
        %789 = vmatpush1.msra.mxu0 %v769
        %790 = vmatprep.subr.mxu0 0.0
        %791 = vmatpush1.msra.mxu0 %v770
        %792 = vmatprep.subr.mxu0 0.0
        %793 = vmatpush1.msra.mxu0 %v771
        %794 = vmatprep.subr.mxu0 0.0
        %795 = vmatpush1.msra.mxu0 %v772
        %796 = vmatprep.subr.mxu0 0.0
        %797 = vmatpush1.msra.mxu0 %v773
        %798 = vmatprep.subr.mxu0 0.0
        %799 = vmatpush1.msra.mxu0 %v774
        %800 = vmatprep.subr.mxu0 0.0
        %801 = vmatpush1.msra.mxu0 %v775
        %802 = vmatprep.subr.mxu0 0.0
        %803 = vmatpush1.msra.mxu0 %v776
        %804 = vmatprep.subr.mxu0 0.0
        %805 = vmatpush1.msra.mxu0 %v777
        %806 = vmatprep.subr.mxu0 0.0
        %807 = vmatpush1.msra.mxu0 %v778
        %808 = vmatprep.subr.mxu0 0.0
        %809 = vmatpush1.msra.mxu0 %v779
        %810 = vmatprep.subr.mxu0 0.0
        %811 = vmatpush1.msra.mxu0 %v780
        %812 = vmatprep.subr.mxu0 0.0
        %813 = vmatpush1.msra.mxu0 %v781
        %814 = vmatprep.subr.mxu0 0.0
        %815 = vmatpush1.msra.mxu0 0.0
        %816 = vmatprep.subr.mxu0 0.0
        %817 = vmatpush1.msra.mxu0 0.0
        %818 = vmatprep.subr.mxu0 0.0
        %819 = vmatpush1.msra.mxu0 0.0
        %820 = vmatprep.subr.mxu0 0.0
        %821 = vmatpush1.msra.mxu0 0.0
        %822 = vmatprep.subr.mxu0 0.0
        %823 = vmatpush1.msra.mxu0 0.0
        %824 = vmatprep.subr.mxu0 0.0
        %825 = vmatpush1.msra.mxu0 0.0
        %826 = vmatprep.subr.mxu0 0.0
        %827 = vmatpush1.msra.mxu0 0.0
        %828 = vmatprep.subr.mxu0 0.0
        %829 = vmatpush1.msra.mxu0 0.0
        %830 = vmatprep.subr.mxu0 0.0
        %831 = vmatpush1.msra.mxu0 0.0
        %832 = vmatprep.subr.mxu0 0.0
        %833 = vmatpush1.msra.mxu0 0.0
        %834 = vmatprep.subr.mxu0 0.0
        %835 = vmatpush1.msra.mxu0 0.0
        %836 = vmatprep.subr.mxu0 0.0
        %837 = vmatpush1.msra.mxu0 0.0
        %838 = vmatprep.subr.mxu0 0.0
        %839 = vmatpush1.msra.mxu0 0.0
        %840 = vmatprep.subr.mxu0 0.0
        %841 = vmatpush1.msra.mxu0 0.0
        %842 = vmatprep.subr.mxu0 0.0
        %843 = vmatpush1.msra.mxu0 0.0
        %844 = vmatprep.subr.mxu0 0.0
        %845 = vmatpush1.msra.mxu0 0.0
        %846 = vmatprep.mubr.f32.mxu0 0.0
        %847 = vmatmul.mubr.f32.gmra.mrb[0].mxu0 %v569
        %v848 = vpop.f32.mrb[0].mxu0
        %v849 = vadd.f32 0.0, %v848
        %v850 = vpop.f32.mrb[0].mxu0
        %851 = vmatprep.mubr.f32.mxu0 0.0
        %852 = vmatmul.mubr.f32.gmra.mrb[0].mxu0 %v570
        %v853 = vpop.f32.mrb[0].mxu0
        %v854 = vadd.f32 0.0, %v853
        %v855 = vpop.f32.mrb[0].mxu0
        %856 = vdwg.mxu0
        %v859 = vrot.slane %v849, 1
        %v860 = vrot.slane %v854, 1
        %v861 = vsel %vm548, %v859, %v860
        %v865 = vsel %vm548, %v860, %v859
        %v866 = vsel %vm272, 0.0, %v861
        %v867 = vsel %vm273, 0.0, %v865
        %v868 = vadd.f32 %v757, %v866
        %v869 = vadd.f32 %v762, %v867
        %v870 = vld [vmem:[%s4] sm:$0x1]
        %v872 = vlaneseq
        %v873 = vshrl.u32 %v872, 7
        %v874 = vsub.s32 0, %v873
        %v875 = vrot.slane %v870, %v874
        %v877 = vadd.f32 %v868, %v875
        %v878 = vadd.f32 %v869, %v875
        %v879 = vmax.f32 %v877, 0.0
        %v880 = vmax.f32 %v878, 0.0
        %881 = vst [vmem:[%s241] sm:$0xff] %v879
        %882 = vst [vmem:[%s241 + $0x8] sm:$0xff] %v880
        %s883 = smul.u32 2, %s17
        %p884 = scmp.lt.s32.totalorder %s883, 3
        %s885 = scalar_select %p884, %s883, 3
        %s886 = smul.addr %s885, 8
        %s887 = scalar_lea.vmem %s5, %s886
        // Predicated region
        $region45: #{double_conv_forward_nhwc.1} parent=39 // pred_check
          %p888 = pneg %p145
        $region46: #{double_conv_forward_nhwc.1} parent=39 // pred_check_branch
          %890 = sbr.rel (%p888) target = $region48
        $region47: #{double_conv_forward_nhwc.1} parent=39 // pred_region
          %s891 = smul.u32 2, %s17
        $region48: #{double_conv_forward_nhwc.1} parent=39 // pred_fallthru
          _
      $region40: #{double_conv_forward_nhwc.1} parent=5 // pred_fallthru
        _
      %p892 = scmp.le.s32.totalorder 2, %s12
      // Predicated region
      $region49: #{double_conv_forward_nhwc.1} parent=5 // pred_check
        %p893 = pneg %p892
      $region50: #{double_conv_forward_nhwc.1} parent=5 // pred_check_branch
        %895 = sbr.rel (%p893) target = $region52
      $region51: #{double_conv_forward_nhwc.1} parent=5 // pred_region
        %s896 = ssub.s32 %s12, 2
        // Predicated region
        $region53: #{double_conv_forward_nhwc.1} parent=51 // pred_check
          %p897 = pneg %p151
        $region54: #{double_conv_forward_nhwc.1} parent=51 // pred_check_branch
          %899 = sbr.rel (%p897) target = $region56
        $region55: #{double_conv_forward_nhwc.1} parent=51 // pred_region
          %s900 = smul.u32 2, %s18
          %p901 = scmp.lt.s32.totalorder %s900, 3
          %s902 = scalar_select %p901, %s900, 3
          %s903 = smul.addr %s902, 8
          %s904 = scalar_lea.vmem %s5, %s903
        $region56: #{double_conv_forward_nhwc.1} parent=51 // pred_fallthru
          _
      $region52: #{double_conv_forward_nhwc.1} parent=5 // pred_fallthru
        _
    $region6: #{double_conv_forward_nhwc.1} parent=1 // loop_footer
      %s16 = sadd.s32 1, %s12
    $region7: #{double_conv_forward_nhwc.1} parent=1 // loop_footer_branch
      %11 = sbr.rel target = $region3
    $region8: #{double_conv_forward_nhwc.1} parent=1 // loop_exit
      _
    %905 = vsyncpa [#allocation3], 1
    %s906 = scalar_lea.sflag [#allocation3], 1
    %907 = vsyncpa %s906, 1

</llo_original>
